<compile_context>
chip_gen: v7x
topology: tpu7x:2x2x1
jax: 0.10.0
libtpu: 0.0.40
codegen_flags: <defaults>
</compile_context>

<pallas_src>
import functools
import math

import jax
import jax.numpy as jnp
from jax.experimental import pallas as pl
from jax.experimental.pallas import tpu as pltpu


# ---------------------------------------------------------------------------
# Fused style-token attention kernel (the main forward path)
# ---------------------------------------------------------------------------
def _stl_attn_kernel(q_ref, embed_ref, wq_ref, wk_ref, wv_ref, out_ref,
                     *, n_heads, scale, average):
    # q_ref:     (TB, d_q)         style_ref batch tile
    # embed_ref: (n_tokens, d_k)   token embedding table
    # wq_ref:    (d_q, n_units)    W_qry, pre-transposed
    # wk_ref:    (d_k, n_units)    W_key, pre-transposed
    # wv_ref:    (d_k, n_units)    W_val, pre-transposed
    # out_ref:   (TB, n_units)
    q_in = q_ref[...].astype(jnp.float32)
    keys_in = jnp.tanh(embed_ref[...].astype(jnp.float32))          # (T, d_k)

    q = jnp.dot(q_in, wq_ref[...].astype(jnp.float32),
                preferred_element_type=jnp.float32)                  # (TB, U)
    k = jnp.dot(keys_in, wk_ref[...].astype(jnp.float32),
                preferred_element_type=jnp.float32)                  # (T, U)
    v = jnp.dot(keys_in, wv_ref[...].astype(jnp.float32),
                preferred_element_type=jnp.float32)                  # (T, U)

    n_units = out_ref.shape[-1]
    dh = n_units // n_heads
    n_tokens = embed_ref.shape[0]

    head_outs = []
    for h in range(n_heads):                      # static unroll, n_heads small
        sl = slice(h * dh, (h + 1) * dh)
        qh, kh, vh = q[:, sl], k[:, sl], v[:, sl]
        # scores_h = q_h @ k_h.T / sqrt(key_dim)
        s = jax.lax.dot_general(qh, kh, (((1,), (1,)), ((), ())),
                                preferred_element_type=jnp.float32) * scale
        if average:                               # style_ntrl: uniform attention
            p = jnp.full_like(s, 1.0 / n_tokens)
        else:
            m = jnp.max(s, axis=-1, keepdims=True)
            e = jnp.exp(s - m)
            p = e / jnp.sum(e, axis=-1, keepdims=True)
        head_outs.append(jnp.dot(p, vh, preferred_element_type=jnp.float32))

    # Single lane-dense store of the full (TB, n_units) output tile.
    out_ref[...] = jnp.concatenate(head_outs, axis=-1).astype(out_ref.dtype)


# ---------------------------------------------------------------------------
# combine() branch: style_embed = style_comb @ (tanh(embed) @ W_val.T)
# ---------------------------------------------------------------------------
def _stl_combine_kernel(comb_ref, embed_ref, wv_ref, out_ref):
    vals = jnp.dot(jnp.tanh(embed_ref[...].astype(jnp.float32)),
                   wv_ref[...].astype(jnp.float32),
                   preferred_element_type=jnp.float32)               # (T, U)
    out_ref[...] = jnp.dot(comb_ref[...].astype(jnp.float32), vals,
                           preferred_element_type=jnp.float32).astype(out_ref.dtype)


# ---------------------------------------------------------------------------
# Batch-tiled launcher
# ---------------------------------------------------------------------------
def _run_batched(kernel, x, consts, n_units, *, block_b=128,
                 out_dtype=jnp.float32):
    """Run `kernel` tiled over the batch (first) axis of `x`."""
    b, feat = x.shape
    if b <= block_b:
        tb, b_pad = b, b                    # full-array block (no 8-multiple req)
    else:
        tb = block_b                        # multiple of 8 -> legal sublane tile
        b_pad = -(-b // tb) * tb
        if b_pad != b:
            x = jnp.pad(x, ((0, b_pad - b), (0, 0)))
    nb = b_pad // tb

    in_specs = [pl.BlockSpec((tb, feat), lambda i: (i, 0))]
    in_specs += [pl.BlockSpec(c.shape, lambda i: (0, 0)) for c in consts]

    out = pl.pallas_call(
        kernel,
        out_shape=jax.ShapeDtypeStruct((b_pad, n_units), out_dtype),
        grid=(nb,),
        in_specs=in_specs,
        out_specs=pl.BlockSpec((tb, n_units), lambda i: (i, 0)),
        compiler_params=pltpu.CompilerParams(
            dimension_semantics=("parallel",)),
    )(x, *consts)
    return out[:b]


# ---------------------------------------------------------------------------
# Public wrapper: JAX/Pallas equivalent of _StyleTokenLayer.forward
# ---------------------------------------------------------------------------
def style_token_layer(style_ref, embed, w_qry, w_key, w_val, n_heads, *,
                      style_comb=None, style_ntrl=False, block_b=128):
    """
    embed : (n_tokens, d_k)         learnable token table (d_k = d_model // n_heads)
    w_qry : (d_model, d_q)          torch nn.Linear weight layout (out, in)
    w_key : (d_model, d_k)
    w_val : (d_model, d_k)
    style_ref : (N, d_q) or (B, F, d_q)
    """
    n_tokens, d_k = embed.shape
    n_units = w_qry.shape[0]

    if style_comb is not None:
        # ---- combine() path ----
        if jnp.issubdtype(style_comb.dtype, jnp.integer):
            style_comb = jax.nn.one_hot(style_comb, n_tokens, dtype=jnp.float32)
        frm = None
        if style_comb.ndim == 3:
            frm = style_comb.shape[:2]
            style_comb = style_comb.reshape(-1, style_comb.shape[-1])
        assert style_comb.ndim == 2 and style_comb.shape[1] == n_tokens
        out = _run_batched(_stl_combine_kernel, style_comb,
                           (embed, w_val.T), n_units, block_b=block_b)
        if frm is not None:
            out = out.reshape(frm + (n_units,))
        return out

    frm = None
    if style_ref.ndim == 3:
        # TODO(synk): fold/unfold are not defined in the reference; assume they
        # flatten / unflatten the leading (batch, frame) axes.
        frm = style_ref.shape[:2]
        style_ref = style_ref.reshape(-1, style_ref.shape[-1])
    assert style_ref.ndim == 2

    scale = 1.0 / math.sqrt(d_k)            # torch divides by key_dim ** 0.5
    kernel = functools.partial(_stl_attn_kernel, n_heads=n_heads, scale=scale,
                               average=bool(style_ntrl))
    out = _run_batched(kernel, style_ref,
                       (embed, w_qry.T, w_key.T, w_val.T), n_units,
                       block_b=block_b)
    if frm is not None:
        out = out.reshape(frm + (n_units,))
    return out


# ---------------------------------------------------------------------------
# Self-test
# ---------------------------------------------------------------------------
if __name__ == "__main__":
    key = jax.random.PRNGKey(0)
    d_model = 32
    n_heads = 4
    n_tokens = 8
    batch = 8
    d_q = d_model // 2              # 16
    d_k = d_model // n_heads        # 8

    k1, k2, k3, k4, k5, k6 = jax.random.split(key, 6)
    style_ref = jax.random.normal(k1, (batch, d_q), jnp.float32)
    embed = 0.5 * jax.random.normal(k2, (n_tokens, d_k), jnp.float32)
    w_qry = jax.random.normal(k3, (d_model, d_q), jnp.float32) / math.sqrt(d_q)
    w_key = jax.random.normal(k4, (d_model, d_k), jnp.float32) / math.sqrt(d_k)
    w_val = jax.random.normal(k5, (d_model, d_k), jnp.float32) / math.sqrt(d_k)

    # Pure-JAX reference of the torch module.
    def ref_forward(sr, average=False):
        q = sr @ w_qry.T
        kt = jnp.tanh(embed)
        kk = kt @ w_key.T
        vv = kt @ w_val.T
        dh = d_model // n_heads
        outs = []
        for h in range(n_heads):
            sl = slice(h * dh, (h + 1) * dh)
            s = (q[:, sl] @ kk[:, sl].T) / (d_k ** 0.5)
            if average:
                p = jnp.full_like(s, 1.0 / n_tokens)
            else:
                p = jax.nn.softmax(s, axis=-1)
            outs.append(p @ vv[:, sl])
        return jnp.concatenate(outs, axis=-1)

    # Main attention path.
    out = jax.block_until_ready(
        style_token_layer(style_ref, embed, w_qry, w_key, w_val, n_heads))
    assert out.shape == (batch, d_model) and out.dtype == jnp.float32
    ref = ref_forward(style_ref)
    assert jnp.allclose(out, ref, atol=1e-3, rtol=1e-3), \
        float(jnp.max(jnp.abs(out - ref)))

    # style_ntrl (uniform attention weights) path.
    out_n = jax.block_until_ready(
        style_token_layer(style_ref, embed, w_qry, w_key, w_val, n_heads,
                          style_ntrl=True))
    ref_n = ref_forward(style_ref, average=True)
    assert jnp.allclose(out_n, ref_n, atol=1e-3, rtol=1e-3)

    # 3-D (folded) input path.
    out_3d = jax.block_until_ready(
        style_token_layer(style_ref.reshape(2, 4, d_q), embed,
                          w_qry, w_key, w_val, n_heads))
    assert out_3d.shape == (2, 4, d_model)
    assert jnp.allclose(out_3d.reshape(batch, d_model), ref, atol=1e-3, rtol=1e-3)

    # combine() path with float combination weights.
    comb = jax.nn.softmax(
        jax.random.normal(k6, (batch, n_tokens), jnp.float32), axis=-1)
    out_c = jax.block_until_ready(
        style_token_layer(style_ref, embed, w_qry, w_key, w_val, n_heads,
                          style_comb=comb))
    ref_c = comb @ (jnp.tanh(embed) @ w_val.T)
    assert jnp.allclose(out_c, ref_c, atol=1e-3, rtol=1e-3)

    # combine() path with integer token ids (one-hot selection).
    ids = jax.random.randint(k6, (batch,), 0, n_tokens, dtype=jnp.int32)
    out_i = jax.block_until_ready(
        style_token_layer(style_ref, embed, w_qry, w_key, w_val, n_heads,
                          style_comb=ids))
    ref_i = (jnp.tanh(embed) @ w_val.T)[ids]
    assert jnp.allclose(out_i, ref_i, atol=1e-3, rtol=1e-3)

    print("KERNEL_OK")
</pallas_src>

<mosaic_0001>
module attributes {stable_mosaic.version = 11 : i64} {
  func.func @_stl_attn_kernel(%arg0: i32, %arg1: memref<8x16xf32, #tpu.memory_space<vmem>>, %arg2: memref<8x8xf32, #tpu.memory_space<vmem>>, %arg3: memref<16x32xf32, #tpu.memory_space<vmem>>, %arg4: memref<8x32xf32, #tpu.memory_space<vmem>>, %arg5: memref<8x32xf32, #tpu.memory_space<vmem>>, %arg6: memref<8x32xf32, #tpu.memory_space<vmem>>) attributes {dimension_semantics = [#tpu.dimension_semantics<parallel>], iteration_bounds = array<i64: 1>, scalar_prefetch = 0 : i64, scratch_operands = 0 : i64, tpu.core_type = #tpu.core_type<tc>, window_params = [{transform_indices = @transform_0, window_bounds = array<i64: 8, 16>}, {pipeline_mode = #tpu.pipeline_mode<synchronous>, transform_indices = @transform_1, window_bounds = array<i64: 8, 8>}, {pipeline_mode = #tpu.pipeline_mode<synchronous>, transform_indices = @transform_2, window_bounds = array<i64: 16, 32>}, {pipeline_mode = #tpu.pipeline_mode<synchronous>, transform_indices = @transform_3, window_bounds = array<i64: 8, 32>}, {pipeline_mode = #tpu.pipeline_mode<synchronous>, transform_indices = @transform_4, window_bounds = array<i64: 8, 32>}, {transform_indices = @transform_5, window_bounds = array<i64: 8, 32>}]} {
    %c0 = arith.constant 0 : index
    %c0_0 = arith.constant 0 : index
    %0 = vector.load %arg1[%c0, %c0_0] : memref<8x16xf32, #tpu.memory_space<vmem>>, vector<8x16xf32>
    %c0_1 = arith.constant 0 : index
    %c0_2 = arith.constant 0 : index
    %1 = vector.load %arg2[%c0_1, %c0_2] : memref<8x8xf32, #tpu.memory_space<vmem>>, vector<8x8xf32>
    %2 = math.tanh %1 : vector<8x8xf32>
    %c0_3 = arith.constant 0 : index
    %c0_4 = arith.constant 0 : index
    %3 = vector.load %arg3[%c0_3, %c0_4] : memref<16x32xf32, #tpu.memory_space<vmem>>, vector<16x32xf32>
    %cst = arith.constant dense<0.000000e+00> : vector<8x32xf32>
    %4 = tpu.matmul %0, %3, %cst {dimension_numbers = #tpu.dot_dimension_numbers<[1], [0], [0], [1], [0, 0, 1, 1], [], []>} : vector<8x16xf32>, vector<16x32xf32>, vector<8x32xf32> -> vector<8x32xf32>
    %c0_5 = arith.constant 0 : index
    %c0_6 = arith.constant 0 : index
    %5 = vector.load %arg4[%c0_5, %c0_6] : memref<8x32xf32, #tpu.memory_space<vmem>>, vector<8x32xf32>
    %cst_7 = arith.constant dense<0.000000e+00> : vector<8x32xf32>
    %6 = tpu.matmul %2, %5, %cst_7 {dimension_numbers = #tpu.dot_dimension_numbers<[1], [0], [0], [1], [0, 0, 1, 1], [], []>} : vector<8x8xf32>, vector<8x32xf32>, vector<8x32xf32> -> vector<8x32xf32>
    %c0_8 = arith.constant 0 : index
    %c0_9 = arith.constant 0 : index
    %7 = vector.load %arg5[%c0_8, %c0_9] : memref<8x32xf32, #tpu.memory_space<vmem>>, vector<8x32xf32>
    %cst_10 = arith.constant dense<0.000000e+00> : vector<8x32xf32>
    %8 = tpu.matmul %2, %7, %cst_10 {dimension_numbers = #tpu.dot_dimension_numbers<[1], [0], [0], [1], [0, 0, 1, 1], [], []>} : vector<8x8xf32>, vector<8x32xf32>, vector<8x32xf32> -> vector<8x32xf32>
    %9 = vector.extract_strided_slice %4 {offsets = [0, 0], sizes = [8, 8], strides = [1, 1]} : vector<8x32xf32> to vector<8x8xf32>
    %10 = vector.extract_strided_slice %6 {offsets = [0, 0], sizes = [8, 8], strides = [1, 1]} : vector<8x32xf32> to vector<8x8xf32>
    %11 = vector.extract_strided_slice %8 {offsets = [0, 0], sizes = [8, 8], strides = [1, 1]} : vector<8x32xf32> to vector<8x8xf32>
    %cst_11 = arith.constant dense<0.000000e+00> : vector<8x8xf32>
    %12 = tpu.matmul %9, %10, %cst_11 {dimension_numbers = #tpu.dot_dimension_numbers<[1], [1], [0], [0], [0, 0, 1, 0], [], []>} : vector<8x8xf32>, vector<8x8xf32>, vector<8x8xf32> -> vector<8x8xf32>
    %cst_12 = arith.constant 0.353553385 : f32
    %13 = vector.broadcast %cst_12 : f32 to vector<8x8xf32>
    %14 = arith.mulf %12, %13 : vector<8x8xf32>
    %cst_13 = arith.constant dense<0xFF800000> : vector<8xf32>
    %15 = vector.multi_reduction <maximumf>, %14, %cst_13 [1] : vector<8x8xf32> to vector<8xf32>
    %16 = vector.shape_cast %15 : vector<8xf32> to vector<8x1xf32>
    %17 = vector.broadcast %16 : vector<8x1xf32> to vector<8x8xf32>
    %18 = arith.subf %14, %17 : vector<8x8xf32>
    %19 = math.exp %18 : vector<8x8xf32>
    %cst_14 = arith.constant dense<0.000000e+00> : vector<8xf32>
    %20 = vector.multi_reduction <add>, %19, %cst_14 [1] : vector<8x8xf32> to vector<8xf32>
    %21 = vector.shape_cast %20 : vector<8xf32> to vector<8x1xf32>
    %22 = vector.broadcast %21 : vector<8x1xf32> to vector<8x8xf32>
    %23 = arith.divf %19, %22 : vector<8x8xf32>
    %cst_15 = arith.constant dense<0.000000e+00> : vector<8x8xf32>
    %24 = tpu.matmul %23, %11, %cst_15 {dimension_numbers = #tpu.dot_dimension_numbers<[1], [0], [0], [1], [0, 0, 1, 1], [], []>} : vector<8x8xf32>, vector<8x8xf32>, vector<8x8xf32> -> vector<8x8xf32>
    %25 = vector.extract_strided_slice %4 {offsets = [0, 8], sizes = [8, 8], strides = [1, 1]} : vector<8x32xf32> to vector<8x8xf32>
    %26 = vector.extract_strided_slice %6 {offsets = [0, 8], sizes = [8, 8], strides = [1, 1]} : vector<8x32xf32> to vector<8x8xf32>
    %27 = vector.extract_strided_slice %8 {offsets = [0, 8], sizes = [8, 8], strides = [1, 1]} : vector<8x32xf32> to vector<8x8xf32>
    %cst_16 = arith.constant dense<0.000000e+00> : vector<8x8xf32>
    %28 = tpu.matmul %25, %26, %cst_16 {dimension_numbers = #tpu.dot_dimension_numbers<[1], [1], [0], [0], [0, 0, 1, 0], [], []>} : vector<8x8xf32>, vector<8x8xf32>, vector<8x8xf32> -> vector<8x8xf32>
    %cst_17 = arith.constant 0.353553385 : f32
    %29 = vector.broadcast %cst_17 : f32 to vector<8x8xf32>
    %30 = arith.mulf %28, %29 : vector<8x8xf32>
    %cst_18 = arith.constant dense<0xFF800000> : vector<8xf32>
    %31 = vector.multi_reduction <maximumf>, %30, %cst_18 [1] : vector<8x8xf32> to vector<8xf32>
    %32 = vector.shape_cast %31 : vector<8xf32> to vector<8x1xf32>
    %33 = vector.broadcast %32 : vector<8x1xf32> to vector<8x8xf32>
    %34 = arith.subf %30, %33 : vector<8x8xf32>
    %35 = math.exp %34 : vector<8x8xf32>
    %cst_19 = arith.constant dense<0.000000e+00> : vector<8xf32>
    %36 = vector.multi_reduction <add>, %35, %cst_19 [1] : vector<8x8xf32> to vector<8xf32>
    %37 = vector.shape_cast %36 : vector<8xf32> to vector<8x1xf32>
    %38 = vector.broadcast %37 : vector<8x1xf32> to vector<8x8xf32>
    %39 = arith.divf %35, %38 : vector<8x8xf32>
    %cst_20 = arith.constant dense<0.000000e+00> : vector<8x8xf32>
    %40 = tpu.matmul %39, %27, %cst_20 {dimension_numbers = #tpu.dot_dimension_numbers<[1], [0], [0], [1], [0, 0, 1, 1], [], []>} : vector<8x8xf32>, vector<8x8xf32>, vector<8x8xf32> -> vector<8x8xf32>
    %41 = vector.extract_strided_slice %4 {offsets = [0, 16], sizes = [8, 8], strides = [1, 1]} : vector<8x32xf32> to vector<8x8xf32>
    %42 = vector.extract_strided_slice %6 {offsets = [0, 16], sizes = [8, 8], strides = [1, 1]} : vector<8x32xf32> to vector<8x8xf32>
    %43 = vector.extract_strided_slice %8 {offsets = [0, 16], sizes = [8, 8], strides = [1, 1]} : vector<8x32xf32> to vector<8x8xf32>
    %cst_21 = arith.constant dense<0.000000e+00> : vector<8x8xf32>
    %44 = tpu.matmul %41, %42, %cst_21 {dimension_numbers = #tpu.dot_dimension_numbers<[1], [1], [0], [0], [0, 0, 1, 0], [], []>} : vector<8x8xf32>, vector<8x8xf32>, vector<8x8xf32> -> vector<8x8xf32>
    %cst_22 = arith.constant 0.353553385 : f32
    %45 = vector.broadcast %cst_22 : f32 to vector<8x8xf32>
    %46 = arith.mulf %44, %45 : vector<8x8xf32>
    %cst_23 = arith.constant dense<0xFF800000> : vector<8xf32>
    %47 = vector.multi_reduction <maximumf>, %46, %cst_23 [1] : vector<8x8xf32> to vector<8xf32>
    %48 = vector.shape_cast %47 : vector<8xf32> to vector<8x1xf32>
    %49 = vector.broadcast %48 : vector<8x1xf32> to vector<8x8xf32>
    %50 = arith.subf %46, %49 : vector<8x8xf32>
    %51 = math.exp %50 : vector<8x8xf32>
    %cst_24 = arith.constant dense<0.000000e+00> : vector<8xf32>
    %52 = vector.multi_reduction <add>, %51, %cst_24 [1] : vector<8x8xf32> to vector<8xf32>
    %53 = vector.shape_cast %52 : vector<8xf32> to vector<8x1xf32>
    %54 = vector.broadcast %53 : vector<8x1xf32> to vector<8x8xf32>
    %55 = arith.divf %51, %54 : vector<8x8xf32>
    %cst_25 = arith.constant dense<0.000000e+00> : vector<8x8xf32>
    %56 = tpu.matmul %55, %43, %cst_25 {dimension_numbers = #tpu.dot_dimension_numbers<[1], [0], [0], [1], [0, 0, 1, 1], [], []>} : vector<8x8xf32>, vector<8x8xf32>, vector<8x8xf32> -> vector<8x8xf32>
    %57 = vector.extract_strided_slice %4 {offsets = [0, 24], sizes = [8, 8], strides = [1, 1]} : vector<8x32xf32> to vector<8x8xf32>
    %58 = vector.extract_strided_slice %6 {offsets = [0, 24], sizes = [8, 8], strides = [1, 1]} : vector<8x32xf32> to vector<8x8xf32>
    %59 = vector.extract_strided_slice %8 {offsets = [0, 24], sizes = [8, 8], strides = [1, 1]} : vector<8x32xf32> to vector<8x8xf32>
    %cst_26 = arith.constant dense<0.000000e+00> : vector<8x8xf32>
    %60 = tpu.matmul %57, %58, %cst_26 {dimension_numbers = #tpu.dot_dimension_numbers<[1], [1], [0], [0], [0, 0, 1, 0], [], []>} : vector<8x8xf32>, vector<8x8xf32>, vector<8x8xf32> -> vector<8x8xf32>
    %cst_27 = arith.constant 0.353553385 : f32
    %61 = vector.broadcast %cst_27 : f32 to vector<8x8xf32>
    %62 = arith.mulf %60, %61 : vector<8x8xf32>
    %cst_28 = arith.constant dense<0xFF800000> : vector<8xf32>
    %63 = vector.multi_reduction <maximumf>, %62, %cst_28 [1] : vector<8x8xf32> to vector<8xf32>
    %64 = vector.shape_cast %63 : vector<8xf32> to vector<8x1xf32>
    %65 = vector.broadcast %64 : vector<8x1xf32> to vector<8x8xf32>
    %66 = arith.subf %62, %65 : vector<8x8xf32>
    %67 = math.exp %66 : vector<8x8xf32>
    %cst_29 = arith.constant dense<0.000000e+00> : vector<8xf32>
    %68 = vector.multi_reduction <add>, %67, %cst_29 [1] : vector<8x8xf32> to vector<8xf32>
    %69 = vector.shape_cast %68 : vector<8xf32> to vector<8x1xf32>
    %70 = vector.broadcast %69 : vector<8x1xf32> to vector<8x8xf32>
    %71 = arith.divf %67, %70 : vector<8x8xf32>
    %cst_30 = arith.constant dense<0.000000e+00> : vector<8x8xf32>
    %72 = tpu.matmul %71, %59, %cst_30 {dimension_numbers = #tpu.dot_dimension_numbers<[1], [0], [0], [1], [0, 0, 1, 1], [], []>} : vector<8x8xf32>, vector<8x8xf32>, vector<8x8xf32> -> vector<8x8xf32>
    %73 = tpu.concatenate %24, %40, %56, %72 in 1 : vector<8x8xf32>, vector<8x8xf32>, vector<8x8xf32>, vector<8x8xf32> -> vector<8x32xf32>
    %c0_31 = arith.constant 0 : index
    %c0_32 = arith.constant 0 : index
    %74 = vector.load %arg6[%c0_31, %c0_32] : memref<8x32xf32, #tpu.memory_space<vmem>>, vector<8x32xf32>
    tpu.vector_store %arg6[%c0_31, %c0_32], %73 {strides = array<i32>} : memref<8x32xf32, #tpu.memory_space<vmem>>, vector<8x32xf32>,
    return
  }
  func.func @transform_0(%arg0: i32) -> (i32, i32) {
    %c0_i32 = arith.constant 0 : i32
    %c0_i32_0 = arith.constant 0 : i32
    return %arg0, %c0_i32 : i32, i32
  }
  func.func @transform_1(%arg0: i32) -> (i32, i32) {
    %c0_i32 = arith.constant 0 : i32
    %c0_i32_0 = arith.constant 0 : i32
    %c0_i32_1 = arith.constant 0 : i32
    return %c0_i32, %c0_i32_0 : i32, i32
  }
  func.func @transform_2(%arg0: i32) -> (i32, i32) {
    %c0_i32 = arith.constant 0 : i32
    %c0_i32_0 = arith.constant 0 : i32
    %c0_i32_1 = arith.constant 0 : i32
    return %c0_i32, %c0_i32_0 : i32, i32
  }
  func.func @transform_3(%arg0: i32) -> (i32, i32) {
    %c0_i32 = arith.constant 0 : i32
    %c0_i32_0 = arith.constant 0 : i32
    %c0_i32_1 = arith.constant 0 : i32
    return %c0_i32, %c0_i32_0 : i32, i32
  }
  func.func @transform_4(%arg0: i32) -> (i32, i32) {
    %c0_i32 = arith.constant 0 : i32
    %c0_i32_0 = arith.constant 0 : i32
    %c0_i32_1 = arith.constant 0 : i32
    return %c0_i32, %c0_i32_0 : i32, i32
  }
  func.func @transform_5(%arg0: i32) -> (i32, i32) {
    %c0_i32 = arith.constant 0 : i32
    %c0_i32_0 = arith.constant 0 : i32
    return %arg0, %c0_i32 : i32, i32
  }
}

</mosaic_0001>

<llo_original>
// kernel: tpu_custom_call.1
$region0: #{tpu_custom_call.1}
  #allocation0 [shape = 'u32[]', space=smem, size = 0x4, offset = 0x4, fixed_abs, tag = 'smem constant byte address 0x4 - core index']
  #allocation1 [shape = 'u32[144,128]{1,0:T(1,128)}', space=vmem, size = 0x12000, scoped, tag = 'internal scratch']
  %s0 = inlined_call_operand.hbm [shape: f32[8,16], index: 0, kind: input, shape index: {}]
  %s1 = inlined_call_operand.hbm [shape: f32[8,8], index: 1, kind: input, shape index: {}]
  %s2 = inlined_call_operand.hbm [shape: f32[16,32], index: 2, kind: input, shape index: {}]
  %s3 = inlined_call_operand.vmem [shape: f32[8,32], index: 3, kind: input, shape index: {}]
  %s4 = inlined_call_operand.hbm [shape: f32[8,32], index: 4, kind: input, shape index: {}]
  %s5 = inlined_call_operand.hbm [shape: f32[8,32], index: 5, kind: output, shape index: {}]
  %s6 = sld [smem:[#allocation0]]
  $region46: #{tpu_custom_call.1} parent=0
    _
  %s8 = ssub.s32 1, %s6
  %s9 = scalar_select 0, %s8, %s6
  $region1: #{tpu_custom_call.1} parent=0
    #allocation2 [shape = 'u8[4096]{0}', space=vmem, size = 0x1000, scoped, tag = 'input window, operand 0, single buffered']
    #allocation3 [shape = 's32[1]{0}', space=sflag, size = 0x4, scoped, tag = 'scoped memory for tpu_custom_call.1']
    #allocation4 [shape = 's32[1]{0}', space=sflag, size = 0x4, scoped, tag = 'scoped memory for tpu_custom_call.1']
    #allocation5 [shape = 'u8[4096]{0}', space=vmem, size = 0x1000, scoped, tag = 'input window, operand 1, single buffered']
    #allocation6 [shape = 's32[1]{0}', space=sflag, size = 0x4, scoped, tag = 'scoped memory for tpu_custom_call.1']
    #allocation7 [shape = 'u8[8192]{0}', space=vmem, size = 0x2000, scoped, tag = 'input window, operand 2, single buffered']
    #allocation8 [shape = 'u8[4096]{0}', space=vmem, size = 0x1000, scoped, tag = 'input window, operand 4, single buffered']
    #allocation9 [shape = 's32[1]{0}', space=sflag, size = 0x4, scoped, tag = 'scoped memory for tpu_custom_call.1']
    #allocation10 [shape = 'u8[4096]{0}', space=vmem, size = 0x1000, scoped, tag = 'output window, operand 0, single buffered']
    %10 = vsyncpa [#allocation3], 0
    %11 = vsyncpa [#allocation6], 0
    %12 = vsyncpa [#allocation9], 0
    %13 = vsyncpa [#allocation4], 0
    // Predicated region
    $region2: #{tpu_custom_call.1} parent=1 // pred_check
      _
    $region3: #{tpu_custom_call.1} parent=1 // pred_check_branch
      %15 = sbr.rel (0) target = $region5
    $region4: #{tpu_custom_call.1} parent=1 // pred_region
      %s17 = ssub.s32 128, 128
      %18 = vsyncadd [#allocation3], %s17
      %s20 = sshll.u32 [#allocation2], 4
      %s21 = int_to_ptr.vmem [resolvable:$true] %s20
      %23 = dma.hbm_to_vmem [thread:$0]  %s0, 128, %s21, [#allocation3]
    $region5: #{tpu_custom_call.1} parent=1 // pred_fallthru
      _
    // Predicated region
    $region6: #{tpu_custom_call.1} parent=1 // pred_check
      _
    $region7: #{tpu_custom_call.1} parent=1 // pred_check_branch
      %25 = sbr.rel (0) target = $region9
    $region8: #{tpu_custom_call.1} parent=1 // pred_region
      %s27 = ssub.s32 128, 128
      %28 = vsyncadd [#allocation6], %s27
      %s30 = sshll.u32 [#allocation5], 4
      %s31 = int_to_ptr.vmem [resolvable:$true] %s30
      %33 = dma.hbm_to_vmem [thread:$0]  %s1, 128, %s31, [#allocation6]
    $region9: #{tpu_custom_call.1} parent=1 // pred_fallthru
      _
    // Predicated region
    $region10: #{tpu_custom_call.1} parent=1 // pred_check
      _
    $region11: #{tpu_custom_call.1} parent=1 // pred_check_branch
      %35 = sbr.rel (0) target = $region13
    $region12: #{tpu_custom_call.1} parent=1 // pred_region
      %s37 = ssub.s32 256, 256
      %38 = vsyncadd [#allocation6], %s37
      %s39 = sshll.u32 [#allocation7], 4
      %s40 = int_to_ptr.vmem [resolvable:$true] %s39
      %45 = dma.hbm_to_vmem [thread:$0]  %s2, 256, %s40, [#allocation6], 128, 128, 8
    $region13: #{tpu_custom_call.1} parent=1 // pred_fallthru
      _
    // Predicated region
    $region14: #{tpu_custom_call.1} parent=1 // pred_check
      _
    $region15: #{tpu_custom_call.1} parent=1 // pred_check_branch
      %47 = sbr.rel (0) target = $region17
    $region16: #{tpu_custom_call.1} parent=1 // pred_region
      _
    $region17: #{tpu_custom_call.1} parent=1 // pred_fallthru
      _
    // Predicated region
    $region18: #{tpu_custom_call.1} parent=1 // pred_check
      _
    $region19: #{tpu_custom_call.1} parent=1 // pred_check_branch
      %49 = sbr.rel (0) target = $region21
    $region20: #{tpu_custom_call.1} parent=1 // pred_region
      %s51 = ssub.s32 128, 128
      %52 = vsyncadd [#allocation9], %s51
      %s54 = sshll.u32 [#allocation8], 4
      %s55 = int_to_ptr.vmem [resolvable:$true] %s54
      %57 = dma.hbm_to_vmem [thread:$0]  %s4, 128, %s55, [#allocation9]
    $region21: #{tpu_custom_call.1} parent=1 // pred_fallthru
      _
    // Predicated region
    $region22: #{tpu_custom_call.1} parent=1 // pred_check
      _
    $region23: #{tpu_custom_call.1} parent=1 // pred_check_branch
      %59 = sbr.rel (0) target = $region25
    $region24: #{tpu_custom_call.1} parent=1 // pred_region
      %60 = dma.done [#allocation3], 128
    $region25: #{tpu_custom_call.1} parent=1 // pred_fallthru
      _
    // Predicated region
    $region26: #{tpu_custom_call.1} parent=1 // pred_check
      _
    $region27: #{tpu_custom_call.1} parent=1 // pred_check_branch
      %62 = sbr.rel (0) target = $region29
    $region28: #{tpu_custom_call.1} parent=1 // pred_region
      %63 = dma.done [#allocation6], 128
    $region29: #{tpu_custom_call.1} parent=1 // pred_fallthru
      _
    // Predicated region
    $region30: #{tpu_custom_call.1} parent=1 // pred_check
      _
    $region31: #{tpu_custom_call.1} parent=1 // pred_check_branch
      %65 = sbr.rel (0) target = $region33
    $region32: #{tpu_custom_call.1} parent=1 // pred_region
      %66 = dma.done [#allocation6], 256
    $region33: #{tpu_custom_call.1} parent=1 // pred_fallthru
      _
    // Predicated region
    $region34: #{tpu_custom_call.1} parent=1 // pred_check
      _
    $region35: #{tpu_custom_call.1} parent=1 // pred_check_branch
      %68 = sbr.rel (0) target = $region37
    $region36: #{tpu_custom_call.1} parent=1 // pred_region
      %69 = dma.done [#allocation9], 128
    $region37: #{tpu_custom_call.1} parent=1 // pred_fallthru
      _
    %v70 = vld [vmem:[#allocation2] sm:$0xff]
    %v71 = vld [vmem:[#allocation5] sm:$0xff]
    %v72 = vtanh.pop %v71
    %v73 = vld [vmem:[#allocation7] sm:$0xff]
    %v74 = vld [vmem:[#allocation7 + $0x8] sm:$0xff]
    %vm75 = vcmask 130048
    %v77 = vsel %vm75, %v70, 0
    %79 = vmatprep.subr.mxu0 0.0
    %80 = vmatpush1.msra.mxu0 %v73
    %81 = vmatprep.subr.mxu0 0.0
    %82 = vmatpush1.msra.mxu0 %v74
    %83 = vmatprep.subr.mxu0 0.0
    %84 = vmatpush1.msra.mxu0 0.0
    %85 = vmatprep.subr.mxu0 0.0
    %86 = vmatpush1.msra.mxu0 0.0
    %87 = vmatprep.subr.mxu0 0.0
    %88 = vmatpush1.msra.mxu0 0.0
    %89 = vmatprep.subr.mxu0 0.0
    %90 = vmatpush1.msra.mxu0 0.0
    %91 = vmatprep.subr.mxu0 0.0
    %92 = vmatpush1.msra.mxu0 0.0
    %93 = vmatprep.subr.mxu0 0.0
    %94 = vmatpush1.msra.mxu0 0.0
    %95 = vmatprep.subr.mxu0 0.0
    %96 = vmatpush1.msra.mxu0 0.0
    %97 = vmatprep.subr.mxu0 0.0
    %98 = vmatpush1.msra.mxu0 0.0
    %99 = vmatprep.subr.mxu0 0.0
    %100 = vmatpush1.msra.mxu0 0.0
    %101 = vmatprep.subr.mxu0 0.0
    %102 = vmatpush1.msra.mxu0 0.0
    %103 = vmatprep.subr.mxu0 0.0
    %104 = vmatpush1.msra.mxu0 0.0
    %105 = vmatprep.subr.mxu0 0.0
    %106 = vmatpush1.msra.mxu0 0.0
    %107 = vmatprep.subr.mxu0 0.0
    %108 = vmatpush1.msra.mxu0 0.0
    %109 = vmatprep.subr.mxu0 0.0
    %110 = vmatpush1.msra.mxu0 0.0
    %111 = vmatprep.subr.mxu0 0.0
    %112 = vmatpush1.msra.mxu0 0.0
    %113 = vmatprep.subr.mxu0 0.0
    %114 = vmatpush1.msra.mxu0 0.0
    %115 = vmatprep.subr.mxu0 0.0
    %116 = vmatpush1.msra.mxu0 0.0
    %117 = vmatprep.subr.mxu0 0.0
    %118 = vmatpush1.msra.mxu0 0.0
    %119 = vmatprep.subr.mxu0 0.0
    %120 = vmatpush1.msra.mxu0 0.0
    %121 = vmatprep.subr.mxu0 0.0
    %122 = vmatpush1.msra.mxu0 0.0
    %123 = vmatprep.subr.mxu0 0.0
    %124 = vmatpush1.msra.mxu0 0.0
    %125 = vmatprep.subr.mxu0 0.0
    %126 = vmatpush1.msra.mxu0 0.0
    %127 = vmatprep.subr.mxu0 0.0
    %128 = vmatpush1.msra.mxu0 0.0
    %129 = vmatprep.subr.mxu0 0.0
    %130 = vmatpush1.msra.mxu0 0.0
    %131 = vmatprep.subr.mxu0 0.0
    %132 = vmatpush1.msra.mxu0 0.0
    %133 = vmatprep.subr.mxu0 0.0
    %134 = vmatpush1.msra.mxu0 0.0
    %135 = vmatprep.subr.mxu0 0.0
    %136 = vmatpush1.msra.mxu0 0.0
    %137 = vmatprep.subr.mxu0 0.0
    %138 = vmatpush1.msra.mxu0 0.0
    %139 = vmatprep.subr.mxu0 0.0
    %140 = vmatpush1.msra.mxu0 0.0
    %141 = vmatprep.subr.mxu0 0.0
    %142 = vmatpush1.msra.mxu0 0.0
    %143 = vmatprep.mubr.f32.mxu0 0.0
    %144 = vmatmul.mubr.f32.gmra.mrb[0].mxu0 %v77
    %v145 = vpop.f32.mrb[0].mxu0
    %v146 = vadd.f32 0.0, %v145
    %v147 = vpop.f32.mrb[0].mxu0
    %148 = vdwg.mxu0
    %v149 = vld [vmem:[%s3] sm:$0xff]
    %vm150 = vcmask 64512
    %v152 = vsel %vm150, %v72, 0
    %154 = vmatprep.subr.mxu0 0.0
    %155 = vmatpush1.msra.mxu0 %v149
    %156 = vmatprep.subr.mxu0 0.0
    %157 = vmatpush1.msra.mxu0 0.0
    %158 = vmatprep.subr.mxu0 0.0
    %159 = vmatpush1.msra.mxu0 0.0
    %160 = vmatprep.subr.mxu0 0.0
    %161 = vmatpush1.msra.mxu0 0.0
    %162 = vmatprep.subr.mxu0 0.0
    %163 = vmatpush1.msra.mxu0 0.0
    %164 = vmatprep.subr.mxu0 0.0
    %165 = vmatpush1.msra.mxu0 0.0
    %166 = vmatprep.subr.mxu0 0.0
    %167 = vmatpush1.msra.mxu0 0.0
    %168 = vmatprep.subr.mxu0 0.0
    %169 = vmatpush1.msra.mxu0 0.0
    %170 = vmatprep.subr.mxu0 0.0
    %171 = vmatpush1.msra.mxu0 0.0
    %172 = vmatprep.subr.mxu0 0.0
    %173 = vmatpush1.msra.mxu0 0.0
    %174 = vmatprep.subr.mxu0 0.0
    %175 = vmatpush1.msra.mxu0 0.0
    %176 = vmatprep.subr.mxu0 0.0
    %177 = vmatpush1.msra.mxu0 0.0
    %178 = vmatprep.subr.mxu0 0.0
    %179 = vmatpush1.msra.mxu0 0.0
    %180 = vmatprep.subr.mxu0 0.0
    %181 = vmatpush1.msra.mxu0 0.0
    %182 = vmatprep.subr.mxu0 0.0
    %183 = vmatpush1.msra.mxu0 0.0
    %184 = vmatprep.subr.mxu0 0.0
    %185 = vmatpush1.msra.mxu0 0.0
    %186 = vmatprep.subr.mxu0 0.0
    %187 = vmatpush1.msra.mxu0 0.0
    %188 = vmatprep.subr.mxu0 0.0
    %189 = vmatpush1.msra.mxu0 0.0
    %190 = vmatprep.subr.mxu0 0.0
    %191 = vmatpush1.msra.mxu0 0.0
    %192 = vmatprep.subr.mxu0 0.0
    %193 = vmatpush1.msra.mxu0 0.0
    %194 = vmatprep.subr.mxu0 0.0
    %195 = vmatpush1.msra.mxu0 0.0
    %196 = vmatprep.subr.mxu0 0.0
    %197 = vmatpush1.msra.mxu0 0.0
    %198 = vmatprep.subr.mxu0 0.0
    %199 = vmatpush1.msra.mxu0 0.0
    %200 = vmatprep.subr.mxu0 0.0
    %201 = vmatpush1.msra.mxu0 0.0
    %202 = vmatprep.subr.mxu0 0.0
    %203 = vmatpush1.msra.mxu0 0.0
    %204 = vmatprep.subr.mxu0 0.0
    %205 = vmatpush1.msra.mxu0 0.0
    %206 = vmatprep.subr.mxu0 0.0
    %207 = vmatpush1.msra.mxu0 0.0
    %208 = vmatprep.subr.mxu0 0.0
    %209 = vmatpush1.msra.mxu0 0.0
    %210 = vmatprep.subr.mxu0 0.0
    %211 = vmatpush1.msra.mxu0 0.0
    %212 = vmatprep.subr.mxu0 0.0
    %213 = vmatpush1.msra.mxu0 0.0
    %214 = vmatprep.subr.mxu0 0.0
    %215 = vmatpush1.msra.mxu0 0.0
    %216 = vmatprep.subr.mxu0 0.0
    %217 = vmatpush1.msra.mxu0 0.0
    %218 = vmatprep.mubr.f32.mxu0 0.0
    %219 = vmatmul.mubr.f32.gmra.mrb[0].mxu0 %v152
    %v220 = vpop.f32.mrb[0].mxu0
    %v221 = vadd.f32 0.0, %v220
    %v222 = vpop.f32.mrb[0].mxu0
    %223 = vdwg.mxu0
    %v224 = vld [vmem:[#allocation8] sm:$0xff]
    %225 = vmatprep.subr.mxu0 0.0
    %226 = vmatpush1.msra.mxu0 %v224
    %227 = vmatprep.subr.mxu0 0.0
    %228 = vmatpush1.msra.mxu0 0.0
    %229 = vmatprep.subr.mxu0 0.0
    %230 = vmatpush1.msra.mxu0 0.0
    %231 = vmatprep.subr.mxu0 0.0
    %232 = vmatpush1.msra.mxu0 0.0
    %233 = vmatprep.subr.mxu0 0.0
    %234 = vmatpush1.msra.mxu0 0.0
    %235 = vmatprep.subr.mxu0 0.0
    %236 = vmatpush1.msra.mxu0 0.0
    %237 = vmatprep.subr.mxu0 0.0
    %238 = vmatpush1.msra.mxu0 0.0
    %239 = vmatprep.subr.mxu0 0.0
    %240 = vmatpush1.msra.mxu0 0.0
    %241 = vmatprep.subr.mxu0 0.0
    %242 = vmatpush1.msra.mxu0 0.0
    %243 = vmatprep.subr.mxu0 0.0
    %244 = vmatpush1.msra.mxu0 0.0
    %245 = vmatprep.subr.mxu0 0.0
    %246 = vmatpush1.msra.mxu0 0.0
    %247 = vmatprep.subr.mxu0 0.0
    %248 = vmatpush1.msra.mxu0 0.0
    %249 = vmatprep.subr.mxu0 0.0
    %250 = vmatpush1.msra.mxu0 0.0
    %251 = vmatprep.subr.mxu0 0.0
    %252 = vmatpush1.msra.mxu0 0.0
    %253 = vmatprep.subr.mxu0 0.0
    %254 = vmatpush1.msra.mxu0 0.0
    %255 = vmatprep.subr.mxu0 0.0
    %256 = vmatpush1.msra.mxu0 0.0
    %257 = vmatprep.subr.mxu0 0.0
    %258 = vmatpush1.msra.mxu0 0.0
    %259 = vmatprep.subr.mxu0 0.0
    %260 = vmatpush1.msra.mxu0 0.0
    %261 = vmatprep.subr.mxu0 0.0
    %262 = vmatpush1.msra.mxu0 0.0
    %263 = vmatprep.subr.mxu0 0.0
    %264 = vmatpush1.msra.mxu0 0.0
    %265 = vmatprep.subr.mxu0 0.0
    %266 = vmatpush1.msra.mxu0 0.0
    %267 = vmatprep.subr.mxu0 0.0
    %268 = vmatpush1.msra.mxu0 0.0
    %269 = vmatprep.subr.mxu0 0.0
    %270 = vmatpush1.msra.mxu0 0.0
    %271 = vmatprep.subr.mxu0 0.0
    %272 = vmatpush1.msra.mxu0 0.0
    %273 = vmatprep.subr.mxu0 0.0
    %274 = vmatpush1.msra.mxu0 0.0
    %275 = vmatprep.subr.mxu0 0.0
    %276 = vmatpush1.msra.mxu0 0.0
    %277 = vmatprep.subr.mxu0 0.0
    %278 = vmatpush1.msra.mxu0 0.0
    %279 = vmatprep.subr.mxu0 0.0
    %280 = vmatpush1.msra.mxu0 0.0
    %281 = vmatprep.subr.mxu0 0.0
    %282 = vmatpush1.msra.mxu0 0.0
    %283 = vmatprep.subr.mxu0 0.0
    %284 = vmatpush1.msra.mxu0 0.0
    %285 = vmatprep.subr.mxu0 0.0
    %286 = vmatpush1.msra.mxu0 0.0
    %287 = vmatprep.subr.mxu0 0.0
    %288 = vmatpush1.msra.mxu0 0.0
    %289 = vmatprep.mubr.f32.mxu0 0.0
    %290 = vmatmul.mubr.f32.gmra.mrb[0].mxu0 %v152
    %v291 = vpop.f32.mrb[0].mxu0
    %v292 = vadd.f32 0.0, %v291
    %v293 = vpop.f32.mrb[0].mxu0
    %294 = vdwg.mxu0
    %v296 = vsel %vm150, %v146, 0
    %v299 = vsel %vm150, %v221, 0
    %301 = vmatprep.subr.mxu0 0.0
    %302 = vmatpush1.xpose.msra.mxu0 %v299
    %303 = vmatprep.subr.mxu0 0.0
    %304 = vmatpush1.xpose.msra.mxu0 0.0
    %305 = vmatprep.subr.mxu0 0.0
    %306 = vmatpush1.xpose.msra.mxu0 0.0
    %307 = vmatprep.subr.mxu0 0.0
    %308 = vmatpush1.xpose.msra.mxu0 0.0
    %309 = vmatprep.subr.mxu0 0.0
    %310 = vmatpush1.xpose.msra.mxu0 0.0
    %311 = vmatprep.subr.mxu0 0.0
    %312 = vmatpush1.xpose.msra.mxu0 0.0
    %313 = vmatprep.subr.mxu0 0.0
    %314 = vmatpush1.xpose.msra.mxu0 0.0
    %315 = vmatprep.subr.mxu0 0.0
    %316 = vmatpush1.xpose.msra.mxu0 0.0
    %317 = vmatprep.subr.mxu0 0.0
    %318 = vmatpush1.xpose.msra.mxu0 0.0
    %319 = vmatprep.subr.mxu0 0.0
    %320 = vmatpush1.xpose.msra.mxu0 0.0
    %321 = vmatprep.subr.mxu0 0.0
    %322 = vmatpush1.xpose.msra.mxu0 0.0
    %323 = vmatprep.subr.mxu0 0.0
    %324 = vmatpush1.xpose.msra.mxu0 0.0
    %325 = vmatprep.subr.mxu0 0.0
    %326 = vmatpush1.xpose.msra.mxu0 0.0
    %327 = vmatprep.subr.mxu0 0.0
    %328 = vmatpush1.xpose.msra.mxu0 0.0
    %329 = vmatprep.subr.mxu0 0.0
    %330 = vmatpush1.xpose.msra.mxu0 0.0
    %331 = vmatprep.subr.mxu0 0.0
    %332 = vmatpush1.xpose.msra.mxu0 0.0
    %333 = vmatprep.subr.mxu0 0.0
    %334 = vmatpush1.xpose.msra.mxu0 0.0
    %335 = vmatprep.subr.mxu0 0.0
    %336 = vmatpush1.xpose.msra.mxu0 0.0
    %337 = vmatprep.subr.mxu0 0.0
    %338 = vmatpush1.xpose.msra.mxu0 0.0
    %339 = vmatprep.subr.mxu0 0.0
    %340 = vmatpush1.xpose.msra.mxu0 0.0
    %341 = vmatprep.subr.mxu0 0.0
    %342 = vmatpush1.xpose.msra.mxu0 0.0
    %343 = vmatprep.subr.mxu0 0.0
    %344 = vmatpush1.xpose.msra.mxu0 0.0
    %345 = vmatprep.subr.mxu0 0.0
    %346 = vmatpush1.xpose.msra.mxu0 0.0
    %347 = vmatprep.subr.mxu0 0.0
    %348 = vmatpush1.xpose.msra.mxu0 0.0
    %349 = vmatprep.subr.mxu0 0.0
    %350 = vmatpush1.xpose.msra.mxu0 0.0
    %351 = vmatprep.subr.mxu0 0.0
    %352 = vmatpush1.xpose.msra.mxu0 0.0
    %353 = vmatprep.subr.mxu0 0.0
    %354 = vmatpush1.xpose.msra.mxu0 0.0
    %355 = vmatprep.subr.mxu0 0.0
    %356 = vmatpush1.xpose.msra.mxu0 0.0
    %357 = vmatprep.subr.mxu0 0.0
    %358 = vmatpush1.xpose.msra.mxu0 0.0
    %359 = vmatprep.subr.mxu0 0.0
    %360 = vmatpush1.xpose.msra.mxu0 0.0
    %361 = vmatprep.subr.mxu0 0.0
    %362 = vmatpush1.xpose.msra.mxu0 0.0
    %363 = vmatprep.subr.mxu0 0.0
    %364 = vmatpush1.xpose.msra.mxu0 0.0
    %365 = vmatprep.mubr.f32.mxu0 0.0
    %366 = vmatmul.mubr.f32.gmra.mrb[0].mxu0 %v296
    %v367 = vpop.f32.mrb[0].mxu0
    %v368 = vadd.f32 0.0, %v367
    %v369 = vpop.f32.mrb[0].mxu0
    %370 = vdwg.mxu0
    %v371 = vmul.f32 %v368, 0.35355338
    %v372 = vsel %vm150, %v371, -inf
    %373 = vmax.xlane.f32.xlu0 %v372
    %v374 = vpop.xlane.xlu0 %373
    %v375 = vsub.f32 %v371, %v374
    %v376 = vmul.f32 %v375, 1.442695
    %v377 = vpow.pop %v376
    %v378 = vsel %vm150, %v377, 0.0
    %379 = vadd.xlane.f32.xlu0 %v378
    %v380 = vpop.xlane.xlu0 %379
    %v381 = vrcp.pop %v380
    %v382 = vmul.f32 %v377, %v381
    %v384 = vsel %vm150, %v382, 0
    %386 = vmatprep.subr.mxu0 0.0
    %387 = vmatpush1.msra.mxu0 %v292
    %388 = vmatprep.subr.mxu0 0.0
    %389 = vmatpush1.msra.mxu0 0.0
    %390 = vmatprep.subr.mxu0 0.0
    %391 = vmatpush1.msra.mxu0 0.0
    %392 = vmatprep.subr.mxu0 0.0
    %393 = vmatpush1.msra.mxu0 0.0
    %394 = vmatprep.subr.mxu0 0.0
    %395 = vmatpush1.msra.mxu0 0.0
    %396 = vmatprep.subr.mxu0 0.0
    %397 = vmatpush1.msra.mxu0 0.0
    %398 = vmatprep.subr.mxu0 0.0
    %399 = vmatpush1.msra.mxu0 0.0
    %400 = vmatprep.subr.mxu0 0.0
    %401 = vmatpush1.msra.mxu0 0.0
    %402 = vmatprep.subr.mxu0 0.0
    %403 = vmatpush1.msra.mxu0 0.0
    %404 = vmatprep.subr.mxu0 0.0
    %405 = vmatpush1.msra.mxu0 0.0
    %406 = vmatprep.subr.mxu0 0.0
    %407 = vmatpush1.msra.mxu0 0.0
    %408 = vmatprep.subr.mxu0 0.0
    %409 = vmatpush1.msra.mxu0 0.0
    %410 = vmatprep.subr.mxu0 0.0
    %411 = vmatpush1.msra.mxu0 0.0
    %412 = vmatprep.subr.mxu0 0.0
    %413 = vmatpush1.msra.mxu0 0.0
    %414 = vmatprep.subr.mxu0 0.0
    %415 = vmatpush1.msra.mxu0 0.0
    %416 = vmatprep.subr.mxu0 0.0
    %417 = vmatpush1.msra.mxu0 0.0
    %418 = vmatprep.subr.mxu0 0.0
    %419 = vmatpush1.msra.mxu0 0.0
    %420 = vmatprep.subr.mxu0 0.0
    %421 = vmatpush1.msra.mxu0 0.0
    %422 = vmatprep.subr.mxu0 0.0
    %423 = vmatpush1.msra.mxu0 0.0
    %424 = vmatprep.subr.mxu0 0.0
    %425 = vmatpush1.msra.mxu0 0.0
    %426 = vmatprep.subr.mxu0 0.0
    %427 = vmatpush1.msra.mxu0 0.0
    %428 = vmatprep.subr.mxu0 0.0
    %429 = vmatpush1.msra.mxu0 0.0
    %430 = vmatprep.subr.mxu0 0.0
    %431 = vmatpush1.msra.mxu0 0.0
    %432 = vmatprep.subr.mxu0 0.0
    %433 = vmatpush1.msra.mxu0 0.0
    %434 = vmatprep.subr.mxu0 0.0
    %435 = vmatpush1.msra.mxu0 0.0
    %436 = vmatprep.subr.mxu0 0.0
    %437 = vmatpush1.msra.mxu0 0.0
    %438 = vmatprep.subr.mxu0 0.0
    %439 = vmatpush1.msra.mxu0 0.0
    %440 = vmatprep.subr.mxu0 0.0
    %441 = vmatpush1.msra.mxu0 0.0
    %442 = vmatprep.subr.mxu0 0.0
    %443 = vmatpush1.msra.mxu0 0.0
    %444 = vmatprep.subr.mxu0 0.0
    %445 = vmatpush1.msra.mxu0 0.0
    %446 = vmatprep.subr.mxu0 0.0
    %447 = vmatpush1.msra.mxu0 0.0
    %448 = vmatprep.subr.mxu0 0.0
    %449 = vmatpush1.msra.mxu0 0.0
    %450 = vmatprep.mubr.f32.mxu0 0.0
    %451 = vmatmul.mubr.f32.gmra.mrb[0].mxu0 %v384
    %v452 = vpop.f32.mrb[0].mxu0
    %v453 = vadd.f32 0.0, %v452
    %v454 = vpop.f32.mrb[0].mxu0
    %455 = vdwg.mxu0
    %456 = vrot.lane.b32.xlu0 %v146, 120
    %v457 = vpop.permute.xlu0 %456
    %458 = vrot.lane.b32.xlu0 %v221, 120
    %v459 = vpop.permute.xlu0 %458
    %v460 = vsel %vm150, %v457, 0
    %v462 = vsel %vm150, %v459, 0
    %464 = vmatprep.subr.mxu0 0.0
    %465 = vmatpush1.xpose.msra.mxu0 %v462
    %466 = vmatprep.subr.mxu0 0.0
    %467 = vmatpush1.xpose.msra.mxu0 0.0
    %468 = vmatprep.subr.mxu0 0.0
    %469 = vmatpush1.xpose.msra.mxu0 0.0
    %470 = vmatprep.subr.mxu0 0.0
    %471 = vmatpush1.xpose.msra.mxu0 0.0
    %472 = vmatprep.subr.mxu0 0.0
    %473 = vmatpush1.xpose.msra.mxu0 0.0
    %474 = vmatprep.subr.mxu0 0.0
    %475 = vmatpush1.xpose.msra.mxu0 0.0
    %476 = vmatprep.subr.mxu0 0.0
    %477 = vmatpush1.xpose.msra.mxu0 0.0
    %478 = vmatprep.subr.mxu0 0.0
    %479 = vmatpush1.xpose.msra.mxu0 0.0
    %480 = vmatprep.subr.mxu0 0.0
    %481 = vmatpush1.xpose.msra.mxu0 0.0
    %482 = vmatprep.subr.mxu0 0.0
    %483 = vmatpush1.xpose.msra.mxu0 0.0
    %484 = vmatprep.subr.mxu0 0.0
    %485 = vmatpush1.xpose.msra.mxu0 0.0
    %486 = vmatprep.subr.mxu0 0.0
    %487 = vmatpush1.xpose.msra.mxu0 0.0
    %488 = vmatprep.subr.mxu0 0.0
    %489 = vmatpush1.xpose.msra.mxu0 0.0
    %490 = vmatprep.subr.mxu0 0.0
    %491 = vmatpush1.xpose.msra.mxu0 0.0
    %492 = vmatprep.subr.mxu0 0.0
    %493 = vmatpush1.xpose.msra.mxu0 0.0
    %494 = vmatprep.subr.mxu0 0.0
    %495 = vmatpush1.xpose.msra.mxu0 0.0
    %496 = vmatprep.subr.mxu0 0.0
    %497 = vmatpush1.xpose.msra.mxu0 0.0
    %498 = vmatprep.subr.mxu0 0.0
    %499 = vmatpush1.xpose.msra.mxu0 0.0
    %500 = vmatprep.subr.mxu0 0.0
    %501 = vmatpush1.xpose.msra.mxu0 0.0
    %502 = vmatprep.subr.mxu0 0.0
    %503 = vmatpush1.xpose.msra.mxu0 0.0
    %504 = vmatprep.subr.mxu0 0.0
    %505 = vmatpush1.xpose.msra.mxu0 0.0
    %506 = vmatprep.subr.mxu0 0.0
    %507 = vmatpush1.xpose.msra.mxu0 0.0
    %508 = vmatprep.subr.mxu0 0.0
    %509 = vmatpush1.xpose.msra.mxu0 0.0
    %510 = vmatprep.subr.mxu0 0.0
    %511 = vmatpush1.xpose.msra.mxu0 0.0
    %512 = vmatprep.subr.mxu0 0.0
    %513 = vmatpush1.xpose.msra.mxu0 0.0
    %514 = vmatprep.subr.mxu0 0.0
    %515 = vmatpush1.xpose.msra.mxu0 0.0
    %516 = vmatprep.subr.mxu0 0.0
    %517 = vmatpush1.xpose.msra.mxu0 0.0
    %518 = vmatprep.subr.mxu0 0.0
    %519 = vmatpush1.xpose.msra.mxu0 0.0
    %520 = vmatprep.subr.mxu0 0.0
    %521 = vmatpush1.xpose.msra.mxu0 0.0
    %522 = vmatprep.subr.mxu0 0.0
    %523 = vmatpush1.xpose.msra.mxu0 0.0
    %524 = vmatprep.subr.mxu0 0.0
    %525 = vmatpush1.xpose.msra.mxu0 0.0
    %526 = vmatprep.subr.mxu0 0.0
    %527 = vmatpush1.xpose.msra.mxu0 0.0
    %528 = vmatprep.mubr.f32.mxu0 0.0
    %529 = vmatmul.mubr.f32.gmra.mrb[0].mxu0 %v460
    %v530 = vpop.f32.mrb[0].mxu0
    %v531 = vadd.f32 0.0, %v530
    %v532 = vpop.f32.mrb[0].mxu0
    %533 = vdwg.mxu0
    %v534 = vmul.f32 %v531, 0.35355338
    %v535 = vsel %vm150, %v534, -inf
    %536 = vmax.xlane.f32.xlu0 %v535
    %v537 = vpop.xlane.xlu0 %536
    %v538 = vsub.f32 %v534, %v537
    %v539 = vmul.f32 %v538, 1.442695
    %v540 = vpow.pop %v539
    %v541 = vsel %vm150, %v540, 0.0
    %542 = vadd.xlane.f32.xlu0 %v541
    %v543 = vpop.xlane.xlu0 %542
    %v544 = vrcp.pop %v543
    %v545 = vmul.f32 %v540, %v544
    %547 = vrot.lane.b32.xlu0 %v292, 120
    %v548 = vpop.permute.xlu0 %547
    %v551 = vsel %vm150, %v545, 0
    %553 = vmatprep.subr.mxu0 0.0
    %554 = vmatpush1.msra.mxu0 %v548
    %555 = vmatprep.subr.mxu0 0.0
    %556 = vmatpush1.msra.mxu0 0.0
    %557 = vmatprep.subr.mxu0 0.0
    %558 = vmatpush1.msra.mxu0 0.0
    %559 = vmatprep.subr.mxu0 0.0
    %560 = vmatpush1.msra.mxu0 0.0
    %561 = vmatprep.subr.mxu0 0.0
    %562 = vmatpush1.msra.mxu0 0.0
    %563 = vmatprep.subr.mxu0 0.0
    %564 = vmatpush1.msra.mxu0 0.0
    %565 = vmatprep.subr.mxu0 0.0
    %566 = vmatpush1.msra.mxu0 0.0
    %567 = vmatprep.subr.mxu0 0.0
    %568 = vmatpush1.msra.mxu0 0.0
    %569 = vmatprep.subr.mxu0 0.0
    %570 = vmatpush1.msra.mxu0 0.0
    %571 = vmatprep.subr.mxu0 0.0
    %572 = vmatpush1.msra.mxu0 0.0
    %573 = vmatprep.subr.mxu0 0.0
    %574 = vmatpush1.msra.mxu0 0.0
    %575 = vmatprep.subr.mxu0 0.0
    %576 = vmatpush1.msra.mxu0 0.0
    %577 = vmatprep.subr.mxu0 0.0
    %578 = vmatpush1.msra.mxu0 0.0
    %579 = vmatprep.subr.mxu0 0.0
    %580 = vmatpush1.msra.mxu0 0.0
    %581 = vmatprep.subr.mxu0 0.0
    %582 = vmatpush1.msra.mxu0 0.0
    %583 = vmatprep.subr.mxu0 0.0
    %584 = vmatpush1.msra.mxu0 0.0
    %585 = vmatprep.subr.mxu0 0.0
    %586 = vmatpush1.msra.mxu0 0.0
    %587 = vmatprep.subr.mxu0 0.0
    %588 = vmatpush1.msra.mxu0 0.0
    %589 = vmatprep.subr.mxu0 0.0
    %590 = vmatpush1.msra.mxu0 0.0
    %591 = vmatprep.subr.mxu0 0.0
    %592 = vmatpush1.msra.mxu0 0.0
    %593 = vmatprep.subr.mxu0 0.0
    %594 = vmatpush1.msra.mxu0 0.0
    %595 = vmatprep.subr.mxu0 0.0
    %596 = vmatpush1.msra.mxu0 0.0
    %597 = vmatprep.subr.mxu0 0.0
    %598 = vmatpush1.msra.mxu0 0.0
    %599 = vmatprep.subr.mxu0 0.0
    %600 = vmatpush1.msra.mxu0 0.0
    %601 = vmatprep.subr.mxu0 0.0
    %602 = vmatpush1.msra.mxu0 0.0
    %603 = vmatprep.subr.mxu0 0.0
    %604 = vmatpush1.msra.mxu0 0.0
    %605 = vmatprep.subr.mxu0 0.0
    %606 = vmatpush1.msra.mxu0 0.0
    %607 = vmatprep.subr.mxu0 0.0
    %608 = vmatpush1.msra.mxu0 0.0
    %609 = vmatprep.subr.mxu0 0.0
    %610 = vmatpush1.msra.mxu0 0.0
    %611 = vmatprep.subr.mxu0 0.0
    %612 = vmatpush1.msra.mxu0 0.0
    %613 = vmatprep.subr.mxu0 0.0
    %614 = vmatpush1.msra.mxu0 0.0
    %615 = vmatprep.subr.mxu0 0.0
    %616 = vmatpush1.msra.mxu0 0.0
    %617 = vmatprep.mubr.f32.mxu0 0.0
    %618 = vmatmul.mubr.f32.gmra.mrb[0].mxu0 %v551
    %v619 = vpop.f32.mrb[0].mxu0
    %v620 = vadd.f32 0.0, %v619
    %v621 = vpop.f32.mrb[0].mxu0
    %622 = vdwg.mxu0
    %623 = vrot.lane.b32.xlu0 %v146, 112
    %v624 = vpop.permute.xlu0 %623
    %625 = vrot.lane.b32.xlu0 %v221, 112
    %v626 = vpop.permute.xlu0 %625
    %v627 = vsel %vm150, %v624, 0
    %v629 = vsel %vm150, %v626, 0
    %631 = vmatprep.subr.mxu0 0.0
    %632 = vmatpush1.xpose.msra.mxu0 %v629
    %633 = vmatprep.subr.mxu0 0.0
    %634 = vmatpush1.xpose.msra.mxu0 0.0
    %635 = vmatprep.subr.mxu0 0.0
    %636 = vmatpush1.xpose.msra.mxu0 0.0
    %637 = vmatprep.subr.mxu0 0.0
    %638 = vmatpush1.xpose.msra.mxu0 0.0
    %639 = vmatprep.subr.mxu0 0.0
    %640 = vmatpush1.xpose.msra.mxu0 0.0
    %641 = vmatprep.subr.mxu0 0.0
    %642 = vmatpush1.xpose.msra.mxu0 0.0
    %643 = vmatprep.subr.mxu0 0.0
    %644 = vmatpush1.xpose.msra.mxu0 0.0
    %645 = vmatprep.subr.mxu0 0.0
    %646 = vmatpush1.xpose.msra.mxu0 0.0
    %647 = vmatprep.subr.mxu0 0.0
    %648 = vmatpush1.xpose.msra.mxu0 0.0
    %649 = vmatprep.subr.mxu0 0.0
    %650 = vmatpush1.xpose.msra.mxu0 0.0
    %651 = vmatprep.subr.mxu0 0.0
    %652 = vmatpush1.xpose.msra.mxu0 0.0
    %653 = vmatprep.subr.mxu0 0.0
    %654 = vmatpush1.xpose.msra.mxu0 0.0
    %655 = vmatprep.subr.mxu0 0.0
    %656 = vmatpush1.xpose.msra.mxu0 0.0
    %657 = vmatprep.subr.mxu0 0.0
    %658 = vmatpush1.xpose.msra.mxu0 0.0
    %659 = vmatprep.subr.mxu0 0.0
    %660 = vmatpush1.xpose.msra.mxu0 0.0
    %661 = vmatprep.subr.mxu0 0.0
    %662 = vmatpush1.xpose.msra.mxu0 0.0
    %663 = vmatprep.subr.mxu0 0.0
    %664 = vmatpush1.xpose.msra.mxu0 0.0
    %665 = vmatprep.subr.mxu0 0.0
    %666 = vmatpush1.xpose.msra.mxu0 0.0
    %667 = vmatprep.subr.mxu0 0.0
    %668 = vmatpush1.xpose.msra.mxu0 0.0
    %669 = vmatprep.subr.mxu0 0.0
    %670 = vmatpush1.xpose.msra.mxu0 0.0
    %671 = vmatprep.subr.mxu0 0.0
    %672 = vmatpush1.xpose.msra.mxu0 0.0
    %673 = vmatprep.subr.mxu0 0.0
    %674 = vmatpush1.xpose.msra.mxu0 0.0
    %675 = vmatprep.subr.mxu0 0.0
    %676 = vmatpush1.xpose.msra.mxu0 0.0
    %677 = vmatprep.subr.mxu0 0.0
    %678 = vmatpush1.xpose.msra.mxu0 0.0
    %679 = vmatprep.subr.mxu0 0.0
    %680 = vmatpush1.xpose.msra.mxu0 0.0
    %681 = vmatprep.subr.mxu0 0.0
    %682 = vmatpush1.xpose.msra.mxu0 0.0
    %683 = vmatprep.subr.mxu0 0.0
    %684 = vmatpush1.xpose.msra.mxu0 0.0
    %685 = vmatprep.subr.mxu0 0.0
    %686 = vmatpush1.xpose.msra.mxu0 0.0
    %687 = vmatprep.subr.mxu0 0.0
    %688 = vmatpush1.xpose.msra.mxu0 0.0
    %689 = vmatprep.subr.mxu0 0.0
    %690 = vmatpush1.xpose.msra.mxu0 0.0
    %691 = vmatprep.subr.mxu0 0.0
    %692 = vmatpush1.xpose.msra.mxu0 0.0
    %693 = vmatprep.subr.mxu0 0.0
    %694 = vmatpush1.xpose.msra.mxu0 0.0
    %695 = vmatprep.mubr.f32.mxu0 0.0
    %696 = vmatmul.mubr.f32.gmra.mrb[0].mxu0 %v627
    %v697 = vpop.f32.mrb[0].mxu0
    %v698 = vadd.f32 0.0, %v697
    %v699 = vpop.f32.mrb[0].mxu0
    %700 = vdwg.mxu0
    %v701 = vmul.f32 %v698, 0.35355338
    %v702 = vsel %vm150, %v701, -inf
    %703 = vmax.xlane.f32.xlu0 %v702
    %v704 = vpop.xlane.xlu0 %703
    %v705 = vsub.f32 %v701, %v704
    %v706 = vmul.f32 %v705, 1.442695
    %v707 = vpow.pop %v706
    %v708 = vsel %vm150, %v707, 0.0
    %709 = vadd.xlane.f32.xlu0 %v708
    %v710 = vpop.xlane.xlu0 %709
    %v711 = vrcp.pop %v710
    %v712 = vmul.f32 %v707, %v711
    %713 = vrot.lane.b32.xlu0 %v292, 112
    %v714 = vpop.permute.xlu0 %713
    %v717 = vsel %vm150, %v712, 0
    %719 = vmatprep.subr.mxu0 0.0
    %720 = vmatpush1.msra.mxu0 %v714
    %721 = vmatprep.subr.mxu0 0.0
    %722 = vmatpush1.msra.mxu0 0.0
    %723 = vmatprep.subr.mxu0 0.0
    %724 = vmatpush1.msra.mxu0 0.0
    %725 = vmatprep.subr.mxu0 0.0
    %726 = vmatpush1.msra.mxu0 0.0
    %727 = vmatprep.subr.mxu0 0.0
    %728 = vmatpush1.msra.mxu0 0.0
    %729 = vmatprep.subr.mxu0 0.0
    %730 = vmatpush1.msra.mxu0 0.0
    %731 = vmatprep.subr.mxu0 0.0
    %732 = vmatpush1.msra.mxu0 0.0
    %733 = vmatprep.subr.mxu0 0.0
    %734 = vmatpush1.msra.mxu0 0.0
    %735 = vmatprep.subr.mxu0 0.0
    %736 = vmatpush1.msra.mxu0 0.0
    %737 = vmatprep.subr.mxu0 0.0
    %738 = vmatpush1.msra.mxu0 0.0
    %739 = vmatprep.subr.mxu0 0.0
    %740 = vmatpush1.msra.mxu0 0.0
    %741 = vmatprep.subr.mxu0 0.0
    %742 = vmatpush1.msra.mxu0 0.0
    %743 = vmatprep.subr.mxu0 0.0
    %744 = vmatpush1.msra.mxu0 0.0
    %745 = vmatprep.subr.mxu0 0.0
    %746 = vmatpush1.msra.mxu0 0.0
    %747 = vmatprep.subr.mxu0 0.0
    %748 = vmatpush1.msra.mxu0 0.0
    %749 = vmatprep.subr.mxu0 0.0
    %750 = vmatpush1.msra.mxu0 0.0
    %751 = vmatprep.subr.mxu0 0.0
    %752 = vmatpush1.msra.mxu0 0.0
    %753 = vmatprep.subr.mxu0 0.0
    %754 = vmatpush1.msra.mxu0 0.0
    %755 = vmatprep.subr.mxu0 0.0
    %756 = vmatpush1.msra.mxu0 0.0
    %757 = vmatprep.subr.mxu0 0.0
    %758 = vmatpush1.msra.mxu0 0.0
    %759 = vmatprep.subr.mxu0 0.0
    %760 = vmatpush1.msra.mxu0 0.0
    %761 = vmatprep.subr.mxu0 0.0
    %762 = vmatpush1.msra.mxu0 0.0
    %763 = vmatprep.subr.mxu0 0.0
    %764 = vmatpush1.msra.mxu0 0.0
    %765 = vmatprep.subr.mxu0 0.0
    %766 = vmatpush1.msra.mxu0 0.0
    %767 = vmatprep.subr.mxu0 0.0
    %768 = vmatpush1.msra.mxu0 0.0
    %769 = vmatprep.subr.mxu0 0.0
    %770 = vmatpush1.msra.mxu0 0.0
    %771 = vmatprep.subr.mxu0 0.0
    %772 = vmatpush1.msra.mxu0 0.0
    %773 = vmatprep.subr.mxu0 0.0
    %774 = vmatpush1.msra.mxu0 0.0
    %775 = vmatprep.subr.mxu0 0.0
    %776 = vmatpush1.msra.mxu0 0.0
    %777 = vmatprep.subr.mxu0 0.0
    %778 = vmatpush1.msra.mxu0 0.0
    %779 = vmatprep.subr.mxu0 0.0
    %780 = vmatpush1.msra.mxu0 0.0
    %781 = vmatprep.subr.mxu0 0.0
    %782 = vmatpush1.msra.mxu0 0.0
    %783 = vmatprep.mubr.f32.mxu0 0.0
    %784 = vmatmul.mubr.f32.gmra.mrb[0].mxu0 %v717
    %v785 = vpop.f32.mrb[0].mxu0
    %v786 = vadd.f32 0.0, %v785
    %v787 = vpop.f32.mrb[0].mxu0
    %788 = vdwg.mxu0
    %789 = vrot.lane.b32.xlu0 %v146, 104
    %v790 = vpop.permute.xlu0 %789
    %791 = vrot.lane.b32.xlu0 %v221, 104
    %v792 = vpop.permute.xlu0 %791
    %v793 = vsel %vm150, %v790, 0
    %v795 = vsel %vm150, %v792, 0
    %797 = vmatprep.subr.mxu0 0.0
    %798 = vmatpush1.xpose.msra.mxu0 %v795
    %799 = vmatprep.subr.mxu0 0.0
    %800 = vmatpush1.xpose.msra.mxu0 0.0
    %801 = vmatprep.subr.mxu0 0.0
    %802 = vmatpush1.xpose.msra.mxu0 0.0
    %803 = vmatprep.subr.mxu0 0.0
    %804 = vmatpush1.xpose.msra.mxu0 0.0
    %805 = vmatprep.subr.mxu0 0.0
    %806 = vmatpush1.xpose.msra.mxu0 0.0
    %807 = vmatprep.subr.mxu0 0.0
    %808 = vmatpush1.xpose.msra.mxu0 0.0
    %809 = vmatprep.subr.mxu0 0.0
    %810 = vmatpush1.xpose.msra.mxu0 0.0
    %811 = vmatprep.subr.mxu0 0.0
    %812 = vmatpush1.xpose.msra.mxu0 0.0
    %813 = vmatprep.subr.mxu0 0.0
    %814 = vmatpush1.xpose.msra.mxu0 0.0
    %815 = vmatprep.subr.mxu0 0.0
    %816 = vmatpush1.xpose.msra.mxu0 0.0
    %817 = vmatprep.subr.mxu0 0.0
    %818 = vmatpush1.xpose.msra.mxu0 0.0
    %819 = vmatprep.subr.mxu0 0.0
    %820 = vmatpush1.xpose.msra.mxu0 0.0
    %821 = vmatprep.subr.mxu0 0.0
    %822 = vmatpush1.xpose.msra.mxu0 0.0
    %823 = vmatprep.subr.mxu0 0.0
    %824 = vmatpush1.xpose.msra.mxu0 0.0
    %825 = vmatprep.subr.mxu0 0.0
    %826 = vmatpush1.xpose.msra.mxu0 0.0
    %827 = vmatprep.subr.mxu0 0.0
    %828 = vmatpush1.xpose.msra.mxu0 0.0
    %829 = vmatprep.subr.mxu0 0.0
    %830 = vmatpush1.xpose.msra.mxu0 0.0
    %831 = vmatprep.subr.mxu0 0.0
    %832 = vmatpush1.xpose.msra.mxu0 0.0
    %833 = vmatprep.subr.mxu0 0.0
    %834 = vmatpush1.xpose.msra.mxu0 0.0
    %835 = vmatprep.subr.mxu0 0.0
    %836 = vmatpush1.xpose.msra.mxu0 0.0
    %837 = vmatprep.subr.mxu0 0.0
    %838 = vmatpush1.xpose.msra.mxu0 0.0
    %839 = vmatprep.subr.mxu0 0.0
    %840 = vmatpush1.xpose.msra.mxu0 0.0
    %841 = vmatprep.subr.mxu0 0.0
    %842 = vmatpush1.xpose.msra.mxu0 0.0
    %843 = vmatprep.subr.mxu0 0.0
    %844 = vmatpush1.xpose.msra.mxu0 0.0
    %845 = vmatprep.subr.mxu0 0.0
    %846 = vmatpush1.xpose.msra.mxu0 0.0
    %847 = vmatprep.subr.mxu0 0.0
    %848 = vmatpush1.xpose.msra.mxu0 0.0
    %849 = vmatprep.subr.mxu0 0.0
    %850 = vmatpush1.xpose.msra.mxu0 0.0
    %851 = vmatprep.subr.mxu0 0.0
    %852 = vmatpush1.xpose.msra.mxu0 0.0
    %853 = vmatprep.subr.mxu0 0.0
    %854 = vmatpush1.xpose.msra.mxu0 0.0
    %855 = vmatprep.subr.mxu0 0.0
    %856 = vmatpush1.xpose.msra.mxu0 0.0
    %857 = vmatprep.subr.mxu0 0.0
    %858 = vmatpush1.xpose.msra.mxu0 0.0
    %859 = vmatprep.subr.mxu0 0.0
    %860 = vmatpush1.xpose.msra.mxu0 0.0
    %861 = vmatprep.mubr.f32.mxu0 0.0
    %862 = vmatmul.mubr.f32.gmra.mrb[0].mxu0 %v793
    %v863 = vpop.f32.mrb[0].mxu0
    %v864 = vadd.f32 0.0, %v863
    %v865 = vpop.f32.mrb[0].mxu0
    %866 = vdwg.mxu0
    %v867 = vmul.f32 %v864, 0.35355338
    %v868 = vsel %vm150, %v867, -inf
    %869 = vmax.xlane.f32.xlu0 %v868
    %v870 = vpop.xlane.xlu0 %869
    %v871 = vsub.f32 %v867, %v870
    %v872 = vmul.f32 %v871, 1.442695
    %v873 = vpow.pop %v872
    %v874 = vsel %vm150, %v873, 0.0
    %875 = vadd.xlane.f32.xlu0 %v874
    %v876 = vpop.xlane.xlu0 %875
    %v877 = vrcp.pop %v876
    %v878 = vmul.f32 %v873, %v877
    %879 = vrot.lane.b32.xlu0 %v292, 104
    %v880 = vpop.permute.xlu0 %879
    %v883 = vsel %vm150, %v878, 0
    %885 = vmatprep.subr.mxu0 0.0
    %886 = vmatpush1.msra.mxu0 %v880
    %887 = vmatprep.subr.mxu0 0.0
    %888 = vmatpush1.msra.mxu0 0.0
    %889 = vmatprep.subr.mxu0 0.0
    %890 = vmatpush1.msra.mxu0 0.0
    %891 = vmatprep.subr.mxu0 0.0
    %892 = vmatpush1.msra.mxu0 0.0
    %893 = vmatprep.subr.mxu0 0.0
    %894 = vmatpush1.msra.mxu0 0.0
    %895 = vmatprep.subr.mxu0 0.0
    %896 = vmatpush1.msra.mxu0 0.0
    %897 = vmatprep.subr.mxu0 0.0
    %898 = vmatpush1.msra.mxu0 0.0
    %899 = vmatprep.subr.mxu0 0.0
    %900 = vmatpush1.msra.mxu0 0.0
    %901 = vmatprep.subr.mxu0 0.0
    %902 = vmatpush1.msra.mxu0 0.0
    %903 = vmatprep.subr.mxu0 0.0
    %904 = vmatpush1.msra.mxu0 0.0
    %905 = vmatprep.subr.mxu0 0.0
    %906 = vmatpush1.msra.mxu0 0.0
    %907 = vmatprep.subr.mxu0 0.0
    %908 = vmatpush1.msra.mxu0 0.0
    %909 = vmatprep.subr.mxu0 0.0
    %910 = vmatpush1.msra.mxu0 0.0
    %911 = vmatprep.subr.mxu0 0.0
    %912 = vmatpush1.msra.mxu0 0.0
    %913 = vmatprep.subr.mxu0 0.0
    %914 = vmatpush1.msra.mxu0 0.0
    %915 = vmatprep.subr.mxu0 0.0
    %916 = vmatpush1.msra.mxu0 0.0
    %917 = vmatprep.subr.mxu0 0.0
    %918 = vmatpush1.msra.mxu0 0.0
    %919 = vmatprep.subr.mxu0 0.0
    %920 = vmatpush1.msra.mxu0 0.0
    %921 = vmatprep.subr.mxu0 0.0
    %922 = vmatpush1.msra.mxu0 0.0
    %923 = vmatprep.subr.mxu0 0.0
    %924 = vmatpush1.msra.mxu0 0.0
    %925 = vmatprep.subr.mxu0 0.0
    %926 = vmatpush1.msra.mxu0 0.0
    %927 = vmatprep.subr.mxu0 0.0
    %928 = vmatpush1.msra.mxu0 0.0
    %929 = vmatprep.subr.mxu0 0.0
    %930 = vmatpush1.msra.mxu0 0.0
    %931 = vmatprep.subr.mxu0 0.0
    %932 = vmatpush1.msra.mxu0 0.0
    %933 = vmatprep.subr.mxu0 0.0
    %934 = vmatpush1.msra.mxu0 0.0
    %935 = vmatprep.subr.mxu0 0.0
    %936 = vmatpush1.msra.mxu0 0.0
    %937 = vmatprep.subr.mxu0 0.0
    %938 = vmatpush1.msra.mxu0 0.0
    %939 = vmatprep.subr.mxu0 0.0
    %940 = vmatpush1.msra.mxu0 0.0
    %941 = vmatprep.subr.mxu0 0.0
    %942 = vmatpush1.msra.mxu0 0.0
    %943 = vmatprep.subr.mxu0 0.0
    %944 = vmatpush1.msra.mxu0 0.0
    %945 = vmatprep.subr.mxu0 0.0
    %946 = vmatpush1.msra.mxu0 0.0
    %947 = vmatprep.subr.mxu0 0.0
    %948 = vmatpush1.msra.mxu0 0.0
    %949 = vmatprep.mubr.f32.mxu0 0.0
    %950 = vmatmul.mubr.f32.gmra.mrb[0].mxu0 %v883
    %v951 = vpop.f32.mrb[0].mxu0
    %v952 = vadd.f32 0.0, %v951
    %v953 = vpop.f32.mrb[0].mxu0
    %954 = vdwg.mxu0
    %956 = vrot.lane.b32.xlu0 %v620, 8
    %v957 = vpop.permute.xlu0 %956
    %960 = vrot.lane.b32.xlu0 %v786, 16
    %v961 = vpop.permute.xlu0 %960
    %964 = vrot.lane.b32.xlu0 %v952, 24
    %v965 = vpop.permute.xlu0 %964
    %v967 = vsel %vm150, %v453, %v957
    %v968 = vsel %vm75, %v967, %v961
    %vm969 = vcmask 195584
    %v970 = vsel %vm969, %v968, %v965
    %vm971 = vcmask 261120
    %972 = vst.msk [vmem:[#allocation10] sm:$0xff] %vm971, %v970
    // Predicated region
    $region38: #{tpu_custom_call.1} parent=1 // pred_check
      _
    $region39: #{tpu_custom_call.1} parent=1 // pred_check_branch
      %974 = sbr.rel (0) target = $region41
    $region40: #{tpu_custom_call.1} parent=1 // pred_region
      %s976 = ssub.s32 128, 128
      %977 = vsyncadd [#allocation4], %s976
      %s979 = sshll.u32 [#allocation10], 4
      %s980 = int_to_ptr.vmem [resolvable:$true] %s979
      %982 = dma.vmem_to_hbm [thread:$0]  %s980, 128, %s5, [#allocation4]
    $region41: #{tpu_custom_call.1} parent=1 // pred_fallthru
      _
    // Predicated region
    $region42: #{tpu_custom_call.1} parent=1 // pred_check
      _
    $region43: #{tpu_custom_call.1} parent=1 // pred_check_branch
      %984 = sbr.rel (0) target = $region45
    $region44: #{tpu_custom_call.1} parent=1 // pred_region
      %985 = dma.done [#allocation4], 128
    $region45: #{tpu_custom_call.1} parent=1 // pred_fallthru
      _
    %986 = vsyncpa [#allocation3], 1
    %987 = vsyncpa [#allocation6], 1
    %988 = vsyncpa [#allocation9], 1
    %989 = vsyncpa [#allocation4], 1

</llo_original>
